<compile_context>
chip_gen: v7x
topology: tpu7x:2x2x1
jax: 0.10.0
libtpu: 0.0.40
codegen_flags: <defaults>
</compile_context>

<pallas_src>
import functools

import jax
import jax.numpy as jnp
from jax.experimental import pallas as pl
from jax.experimental.pallas import tpu as pltpu

LANE = 128  # TPU lane width: last dim of stored tiles padded to a multiple of this


def _pad2d(x, rows, cols):
    r, c = x.shape
    return jnp.pad(x, ((0, rows - r), (0, cols - c)))


def gcn_fused_kernel(a_ref, h0_ref, w_ref, b_ref, o_ref, h_scr, *, n_layers):
    """Fused GCN stack: H <- act(A @ (H @ W_i) + b_i) for each layer i.

    a_ref : [N, N]       bf16 normalized adjacency
    h0_ref: [N, F]       bf16 input features (F = lane-padded width)
    w_ref : [L, F, F]    bf16 per-layer weights (zero-padded)
    b_ref : [L, 1, F]    f32  per-layer bias (zero-padded)
    o_ref : [N, F]       f32  output (lane-dense; pad sliced off outside)
    h_scr : [N, F]       f32  VMEM scratch holding the running H
    """
    a = a_ref[...]                                   # bf16, stays resident
    h_scr[...] = h0_ref[...].astype(jnp.float32)

    for i in range(n_layers):                        # statically unrolled
        h_bf = h_scr[...].astype(jnp.bfloat16)
        # Feature transform on the MXU (bf16 in, f32 accumulate).
        hw = jnp.dot(h_bf, w_ref[i], preferred_element_type=jnp.float32)
        # Neighborhood aggregation on the MXU.
        agg = jnp.dot(a, hw.astype(jnp.bfloat16), preferred_element_type=jnp.float32)
        out = agg + b_ref[i]                         # f32 bias broadcast over nodes
        if i != n_layers - 1:
            out = jnp.maximum(out, 0.0)              # ReLU on all but last layer
            h_scr[...] = out
        else:
            o_ref[...] = out


def gcn_forward(a_norm, features, params):
    """params: list of (W, b). ReLU on all but the last layer.

    Matches GCN.forward; dropout is eval-mode identity.
    """
    n = a_norm.shape[0]
    n_layers = len(params)
    n_class = params[-1][0].shape[1]

    # Lane-dense feature width covering every layer's in/out dim.
    dims = [features.shape[1]] + [w.shape[1] for w, _ in params]
    f_pad = LANE * pl.cdiv(max(dims), LANE)

    # Pad + stack layer parameters; cast MXU operands to bf16 at the boundary.
    a_bf = a_norm.astype(jnp.bfloat16)
    h0 = _pad2d(features, n, f_pad).astype(jnp.bfloat16)
    w_stack = jnp.stack(
        [_pad2d(w, f_pad, f_pad) for w, _ in params]).astype(jnp.bfloat16)
    b_stack = jnp.stack(
        [_pad2d(b, 1, f_pad) for _, b in params]).astype(jnp.float32)

    flops = n_layers * (2 * n * f_pad * f_pad + 2 * n * n * f_pad)
    bytes_accessed = (a_bf.size * 2 + h0.size * 2 + w_stack.size * 2
                      + b_stack.size * 4 + n * f_pad * 4)
    cost = pl.CostEstimate(flops=flops, transcendentals=0,
                           bytes_accessed=bytes_accessed)

    kernel = functools.partial(gcn_fused_kernel, n_layers=n_layers)
    out = pl.pallas_call(
        kernel,
        out_shape=jax.ShapeDtypeStruct((n, f_pad), jnp.float32),
        in_specs=[
            pl.BlockSpec((n, n), lambda: (0, 0)),
            pl.BlockSpec((n, f_pad), lambda: (0, 0)),
            pl.BlockSpec((n_layers, f_pad, f_pad), lambda: (0, 0, 0)),
            pl.BlockSpec((n_layers, 1, f_pad), lambda: (0, 0, 0)),
        ],
        out_specs=pl.BlockSpec((n, f_pad), lambda: (0, 0)),
        scratch_shapes=[pltpu.VMEM((n, f_pad), jnp.float32)],
        cost_estimate=cost,
        compiler_params=pltpu.CompilerParams(),
    )(a_bf, h0, w_stack, b_stack)

    return out[:, :n_class]


def build_normalized_adjacency(key, n_nodes, p_edge=0.2):
    """Dense symmetric random graph with self-loops, D^{-1/2} A D^{-1/2}."""
    bern = jax.random.bernoulli(key, p_edge, (n_nodes, n_nodes)).astype(jnp.float32)
    adj = jnp.maximum(bern, bern.T)                      # symmetric
    adj = jnp.maximum(adj, jnp.eye(n_nodes, dtype=jnp.float32))  # self-loops
    deg = adj.sum(axis=1)
    d_inv_sqrt = 1.0 / jnp.sqrt(deg)
    return adj * d_inv_sqrt[:, None] * d_inv_sqrt[None, :]


def init_params(key, in_feats, n_hidden, n_class, n_layers):
    """GraphConv stack: in->hidden, (n_layers-1) x hidden->hidden, hidden->class."""
    dims = [in_feats] + [n_hidden] * n_layers + [n_class]
    params = []
    for i in range(len(dims) - 1):
        key, kw = jax.random.split(key)
        fan_in, fan_out = dims[i], dims[i + 1]
        scale = jnp.sqrt(6.0 / (fan_in + fan_out))       # Glorot-uniform-ish
        w = jax.random.uniform(kw, (fan_in, fan_out), jnp.float32, -scale, scale)
        b = jnp.zeros((1, fan_out), jnp.float32)
        params.append((w, b))
    return params


if __name__ == "__main__":
    # Small deterministic config.
    N_NODES = 64
    IN_FEATS = 16
    N_HIDDEN = 32
    N_CLASS = 8
    N_LAYERS = 2  # -> 3 GraphConv layers total (in->h, h->h, h->class)

    root = jax.random.PRNGKey(0)
    k_graph, k_feat, k_par = jax.random.split(root, 3)

    a_norm = build_normalized_adjacency(k_graph, N_NODES)
    features = jax.random.normal(k_feat, (N_NODES, IN_FEATS), jnp.float32)
    params = init_params(k_par, IN_FEATS, N_HIDDEN, N_CLASS, N_LAYERS)

    out = gcn_forward(a_norm, features, params)
    out = jax.block_until_ready(out)
    assert out.shape == (N_NODES, N_CLASS)

    # Reference 1: same math with matched bf16 operand rounding (kernel check).
    a_bf = a_norm.astype(jnp.bfloat16)
    h_ref = features.astype(jnp.bfloat16)
    for i, (w, b) in enumerate(params):
        hw = jnp.dot(h_ref, w.astype(jnp.bfloat16),
                     preferred_element_type=jnp.float32)
        h32 = jnp.dot(a_bf, hw.astype(jnp.bfloat16),
                      preferred_element_type=jnp.float32) + b
        if i != len(params) - 1:
            h32 = jnp.maximum(h32, 0.0)
            h_ref = h32.astype(jnp.bfloat16)
        else:
            h_ref = h32
    assert jnp.allclose(out, h_ref, atol=1e-2, rtol=1e-2)

    # Reference 2: original full-f32 semantics (bf16 MXU operands -> looser tol).
    h_f32 = features
    for i, (w, b) in enumerate(params):
        h_f32 = a_norm @ (h_f32 @ w) + b
        if i != len(params) - 1:
            h_f32 = jnp.maximum(h_f32, 0.0)
    assert jnp.allclose(out, h_f32, atol=2e-2, rtol=5e-2)

    print("KERNEL_OK")
</pallas_src>

<mosaic_0001>
module attributes {stable_mosaic.version = 11 : i64} {
  func.func @gcn_fused_kernel(%arg0: memref<64x64xbf16, #tpu.memory_space<vmem>>, %arg1: memref<64x128xbf16, #tpu.memory_space<vmem>>, %arg2: memref<3x128x128xbf16, #tpu.memory_space<vmem>>, %arg3: memref<3x1x128xf32, #tpu.memory_space<vmem>>, %arg4: memref<64x128xf32, #tpu.memory_space<vmem>>, %arg5: memref<64x128xf32, #tpu.memory_space<vmem>>) attributes {dimension_semantics = [], scalar_prefetch = 0 : i64, scratch_operands = 1 : i64, tpu.core_type = #tpu.core_type<tc>} {
    %c0 = arith.constant 0 : index
    %c0_0 = arith.constant 0 : index
    %0 = vector.load %arg0[%c0, %c0_0] : memref<64x64xbf16, #tpu.memory_space<vmem>>, vector<64x64xbf16>
    %c0_1 = arith.constant 0 : index
    %c0_2 = arith.constant 0 : index
    %1 = vector.load %arg1[%c0_1, %c0_2] : memref<64x128xbf16, #tpu.memory_space<vmem>>, vector<64x128xbf16>
    %2 = arith.extf %1 : vector<64x128xbf16> to vector<64x128xf32>
    %c0_3 = arith.constant 0 : index
    %c0_4 = arith.constant 0 : index
    %3 = vector.load %arg5[%c0_3, %c0_4] : memref<64x128xf32, #tpu.memory_space<vmem>>, vector<64x128xf32>
    tpu.vector_store %arg5[%c0_3, %c0_4], %2 {strides = array<i32>} : memref<64x128xf32, #tpu.memory_space<vmem>>, vector<64x128xf32>,
    %c0_5 = arith.constant 0 : index
    %c0_6 = arith.constant 0 : index
    %4 = vector.load %arg5[%c0_5, %c0_6] : memref<64x128xf32, #tpu.memory_space<vmem>>, vector<64x128xf32>
    %5 = arith.truncf %4 : vector<64x128xf32> to vector<64x128xbf16>
    %c0_7 = arith.constant 0 : index
    %c0_8 = arith.constant 0 : index
    %c0_9 = arith.constant 0 : index
    %6 = vector.load %arg2[%c0_7, %c0_8, %c0_9] : memref<3x128x128xbf16, #tpu.memory_space<vmem>>, vector<1x128x128xbf16>
    %7 = vector.shape_cast %6 : vector<1x128x128xbf16> to vector<128x128xbf16>
    %cst = arith.constant dense<0.000000e+00> : vector<64x128xf32>
    %8 = tpu.matmul %5, %7, %cst {dimension_numbers = #tpu.dot_dimension_numbers<[1], [0], [0], [1], [0, 0, 1, 1], [], []>} : vector<64x128xbf16>, vector<128x128xbf16>, vector<64x128xf32> -> vector<64x128xf32>
    %9 = arith.truncf %8 : vector<64x128xf32> to vector<64x128xbf16>
    %cst_10 = arith.constant dense<0.000000e+00> : vector<64x128xf32>
    %10 = tpu.matmul %0, %9, %cst_10 {dimension_numbers = #tpu.dot_dimension_numbers<[1], [0], [0], [1], [0, 0, 1, 1], [], []>} : vector<64x64xbf16>, vector<64x128xbf16>, vector<64x128xf32> -> vector<64x128xf32>
    %c0_11 = arith.constant 0 : index
    %c0_12 = arith.constant 0 : index
    %c0_13 = arith.constant 0 : index
    %11 = vector.load %arg3[%c0_11, %c0_12, %c0_13] : memref<3x1x128xf32, #tpu.memory_space<vmem>>, vector<1x1x128xf32>
    %12 = vector.shape_cast %11 : vector<1x1x128xf32> to vector<1x128xf32>
    %13 = vector.broadcast %12 : vector<1x128xf32> to vector<64x128xf32>
    %14 = arith.addf %10, %13 : vector<64x128xf32>
    %cst_14 = arith.constant 0.000000e+00 : f32
    %15 = vector.broadcast %cst_14 : f32 to vector<64x128xf32>
    %16 = arith.maximumf %14, %15 : vector<64x128xf32>
    %c0_15 = arith.constant 0 : index
    %c0_16 = arith.constant 0 : index
    %17 = vector.load %arg5[%c0_15, %c0_16] : memref<64x128xf32, #tpu.memory_space<vmem>>, vector<64x128xf32>
    tpu.vector_store %arg5[%c0_15, %c0_16], %16 {strides = array<i32>} : memref<64x128xf32, #tpu.memory_space<vmem>>, vector<64x128xf32>,
    %c0_17 = arith.constant 0 : index
    %c0_18 = arith.constant 0 : index
    %18 = vector.load %arg5[%c0_17, %c0_18] : memref<64x128xf32, #tpu.memory_space<vmem>>, vector<64x128xf32>
    %19 = arith.truncf %18 : vector<64x128xf32> to vector<64x128xbf16>
    %c1 = arith.constant 1 : index
    %c0_19 = arith.constant 0 : index
    %c0_20 = arith.constant 0 : index
    %20 = vector.load %arg2[%c1, %c0_19, %c0_20] : memref<3x128x128xbf16, #tpu.memory_space<vmem>>, vector<1x128x128xbf16>
    %21 = vector.shape_cast %20 : vector<1x128x128xbf16> to vector<128x128xbf16>
    %cst_21 = arith.constant dense<0.000000e+00> : vector<64x128xf32>
    %22 = tpu.matmul %19, %21, %cst_21 {dimension_numbers = #tpu.dot_dimension_numbers<[1], [0], [0], [1], [0, 0, 1, 1], [], []>} : vector<64x128xbf16>, vector<128x128xbf16>, vector<64x128xf32> -> vector<64x128xf32>
    %23 = arith.truncf %22 : vector<64x128xf32> to vector<64x128xbf16>
    %cst_22 = arith.constant dense<0.000000e+00> : vector<64x128xf32>
    %24 = tpu.matmul %0, %23, %cst_22 {dimension_numbers = #tpu.dot_dimension_numbers<[1], [0], [0], [1], [0, 0, 1, 1], [], []>} : vector<64x64xbf16>, vector<64x128xbf16>, vector<64x128xf32> -> vector<64x128xf32>
    %c1_23 = arith.constant 1 : index
    %c0_24 = arith.constant 0 : index
    %c0_25 = arith.constant 0 : index
    %25 = vector.load %arg3[%c1_23, %c0_24, %c0_25] : memref<3x1x128xf32, #tpu.memory_space<vmem>>, vector<1x1x128xf32>
    %26 = vector.shape_cast %25 : vector<1x1x128xf32> to vector<1x128xf32>
    %27 = vector.broadcast %26 : vector<1x128xf32> to vector<64x128xf32>
    %28 = arith.addf %24, %27 : vector<64x128xf32>
    %cst_26 = arith.constant 0.000000e+00 : f32
    %29 = vector.broadcast %cst_26 : f32 to vector<64x128xf32>
    %30 = arith.maximumf %28, %29 : vector<64x128xf32>
    %c0_27 = arith.constant 0 : index
    %c0_28 = arith.constant 0 : index
    %31 = vector.load %arg5[%c0_27, %c0_28] : memref<64x128xf32, #tpu.memory_space<vmem>>, vector<64x128xf32>
    tpu.vector_store %arg5[%c0_27, %c0_28], %30 {strides = array<i32>} : memref<64x128xf32, #tpu.memory_space<vmem>>, vector<64x128xf32>,
    %c0_29 = arith.constant 0 : index
    %c0_30 = arith.constant 0 : index
    %32 = vector.load %arg5[%c0_29, %c0_30] : memref<64x128xf32, #tpu.memory_space<vmem>>, vector<64x128xf32>
    %33 = arith.truncf %32 : vector<64x128xf32> to vector<64x128xbf16>
    %c2 = arith.constant 2 : index
    %c0_31 = arith.constant 0 : index
    %c0_32 = arith.constant 0 : index
    %34 = vector.load %arg2[%c2, %c0_31, %c0_32] : memref<3x128x128xbf16, #tpu.memory_space<vmem>>, vector<1x128x128xbf16>
    %35 = vector.shape_cast %34 : vector<1x128x128xbf16> to vector<128x128xbf16>
    %cst_33 = arith.constant dense<0.000000e+00> : vector<64x128xf32>
    %36 = tpu.matmul %33, %35, %cst_33 {dimension_numbers = #tpu.dot_dimension_numbers<[1], [0], [0], [1], [0, 0, 1, 1], [], []>} : vector<64x128xbf16>, vector<128x128xbf16>, vector<64x128xf32> -> vector<64x128xf32>
    %37 = arith.truncf %36 : vector<64x128xf32> to vector<64x128xbf16>
    %cst_34 = arith.constant dense<0.000000e+00> : vector<64x128xf32>
    %38 = tpu.matmul %0, %37, %cst_34 {dimension_numbers = #tpu.dot_dimension_numbers<[1], [0], [0], [1], [0, 0, 1, 1], [], []>} : vector<64x64xbf16>, vector<64x128xbf16>, vector<64x128xf32> -> vector<64x128xf32>
    %c2_35 = arith.constant 2 : index
    %c0_36 = arith.constant 0 : index
    %c0_37 = arith.constant 0 : index
    %39 = vector.load %arg3[%c2_35, %c0_36, %c0_37] : memref<3x1x128xf32, #tpu.memory_space<vmem>>, vector<1x1x128xf32>
    %40 = vector.shape_cast %39 : vector<1x1x128xf32> to vector<1x128xf32>
    %41 = vector.broadcast %40 : vector<1x128xf32> to vector<64x128xf32>
    %42 = arith.addf %38, %41 : vector<64x128xf32>
    %c0_38 = arith.constant 0 : index
    %c0_39 = arith.constant 0 : index
    %43 = vector.load %arg4[%c0_38, %c0_39] : memref<64x128xf32, #tpu.memory_space<vmem>>, vector<64x128xf32>
    tpu.vector_store %arg4[%c0_38, %c0_39], %42 {strides = array<i32>} : memref<64x128xf32, #tpu.memory_space<vmem>>, vector<64x128xf32>,
    return
  }
}

</mosaic_0001>

<llo_original>
// kernel: tpu_custom_call.1
$region0: #{tpu_custom_call.1}
  #allocation0 [shape = 'u32[]', space=smem, size = 0x4, offset = 0x4, fixed_abs, tag = 'smem constant byte address 0x4 - core index']
  #allocation1 [shape = 'u32[144,128]{1,0:T(1,128)}', space=vmem, size = 0x12000, scoped, tag = 'internal scratch']
  #allocation2 [shape = 'f32[64,128]{1,0:T(8,128)}', space=vmem, size = 0x8000, scoped, tag = 'scratch operand']
  %s0 = inlined_call_operand.hbm [shape: bf16[64,64], index: 0, kind: input, shape index: {}]
  %s1 = inlined_call_operand.hbm [shape: bf16[64,128], index: 1, kind: input, shape index: {}]
  %s2 = inlined_call_operand.hbm [shape: bf16[3,128,128], index: 2, kind: input, shape index: {}]
  %s3 = inlined_call_operand.vmem [shape: f32[3,1,128], index: 3, kind: input, shape index: {}]
  %s4 = inlined_call_operand.hbm [shape: f32[64,128], index: 4, kind: output, shape index: {}]
  %s5 = sld [smem:[#allocation0]]
  $region38: #{tpu_custom_call.1} parent=0
    _
  %s7 = ssub.s32 1, %s5
  %s8 = scalar_select 0, %s7, %s5
  $region1: #{tpu_custom_call.1} parent=0
    #allocation3 [shape = 'u8[16384]{0}', space=vmem, size = 0x4000, scoped, tag = 'input window, operand 0, single buffered']
    #allocation4 [shape = 's32[1]{0}', space=sflag, size = 0x4, scoped, tag = 'scoped memory for tpu_custom_call.1']
    #allocation5 [shape = 's32[1]{0}', space=sflag, size = 0x4, scoped, tag = 'scoped memory for tpu_custom_call.1']
    #allocation6 [shape = 'u8[16384]{0}', space=vmem, size = 0x4000, scoped, tag = 'input window, operand 1, single buffered']
    #allocation7 [shape = 's32[1]{0}', space=sflag, size = 0x4, scoped, tag = 'scoped memory for tpu_custom_call.1']
    #allocation8 [shape = 'u8[98304]{0}', space=vmem, size = 0x18000, scoped, tag = 'input window, operand 2, single buffered']
    #allocation9 [shape = 'u8[32768]{0}', space=vmem, size = 0x8000, scoped, tag = 'output window, operand 0, single buffered']
    %9 = vsyncpa [#allocation4], 0
    %10 = vsyncpa [#allocation7], 0
    %11 = vsyncpa [#allocation5], 0
    // Predicated region
    $region2: #{tpu_custom_call.1} parent=1 // pred_check
      _
    $region3: #{tpu_custom_call.1} parent=1 // pred_check_branch
      %13 = sbr.rel (0) target = $region5
    $region4: #{tpu_custom_call.1} parent=1 // pred_region
      %s15 = ssub.s32 512, 512
      %16 = vsyncadd [#allocation4], %s15
      %s17 = sshll.u32 [#allocation3], 4
      %s18 = int_to_ptr.vmem [resolvable:$true] %s17
      %23 = dma.hbm_to_vmem [thread:$0]  %s0, 512, %s18, [#allocation4], 64, 64, 4
    $region5: #{tpu_custom_call.1} parent=1 // pred_fallthru
      _
    // Predicated region
    $region6: #{tpu_custom_call.1} parent=1 // pred_check
      _
    $region7: #{tpu_custom_call.1} parent=1 // pred_check_branch
      %25 = sbr.rel (0) target = $region9
    $region8: #{tpu_custom_call.1} parent=1 // pred_region
      %s27 = ssub.s32 512, 512
      %28 = vsyncadd [#allocation7], %s27
      %s29 = sshll.u32 [#allocation6], 4
      %s30 = int_to_ptr.vmem [resolvable:$true] %s29
      %35 = dma.hbm_to_vmem [thread:$0]  %s1, 512, %s30, [#allocation7], 64, 64, 4
    $region9: #{tpu_custom_call.1} parent=1 // pred_fallthru
      _
    // Predicated region
    $region10: #{tpu_custom_call.1} parent=1 // pred_check
      _
    $region11: #{tpu_custom_call.1} parent=1 // pred_check_branch
      %37 = sbr.rel (0) target = $region13
    $region12: #{tpu_custom_call.1} parent=1 // pred_region
      %s39 = ssub.s32 3072, 3072
      %40 = vsyncadd [#allocation7], %s39
      %s41 = sshll.u32 [#allocation8], 4
      %s42 = int_to_ptr.vmem [resolvable:$true] %s41
      %47 = dma.hbm_to_vmem [thread:$0]  %s2, 3072, %s42, [#allocation7], 64, 64, 4
    $region13: #{tpu_custom_call.1} parent=1 // pred_fallthru
      _
    // Predicated region
    $region14: #{tpu_custom_call.1} parent=1 // pred_check
      _
    $region15: #{tpu_custom_call.1} parent=1 // pred_check_branch
      %49 = sbr.rel (0) target = $region17
    $region16: #{tpu_custom_call.1} parent=1 // pred_region
      _
    $region17: #{tpu_custom_call.1} parent=1 // pred_fallthru
      _
    // Predicated region
    $region18: #{tpu_custom_call.1} parent=1 // pred_check
      _
    $region19: #{tpu_custom_call.1} parent=1 // pred_check_branch
      %51 = sbr.rel (0) target = $region21
    $region20: #{tpu_custom_call.1} parent=1 // pred_region
      %52 = dma.done [#allocation4], 512
    $region21: #{tpu_custom_call.1} parent=1 // pred_fallthru
      _
    // Predicated region
    $region22: #{tpu_custom_call.1} parent=1 // pred_check
      _
    $region23: #{tpu_custom_call.1} parent=1 // pred_check_branch
      %54 = sbr.rel (0) target = $region25
    $region24: #{tpu_custom_call.1} parent=1 // pred_region
      %55 = dma.done [#allocation7], 512
    $region25: #{tpu_custom_call.1} parent=1 // pred_fallthru
      _
    // Predicated region
    $region26: #{tpu_custom_call.1} parent=1 // pred_check
      _
    $region27: #{tpu_custom_call.1} parent=1 // pred_check_branch
      %57 = sbr.rel (0) target = $region29
    $region28: #{tpu_custom_call.1} parent=1 // pred_region
      %58 = dma.done [#allocation7], 3072
    $region29: #{tpu_custom_call.1} parent=1 // pred_fallthru
      _
    %v60 = vld [vmem:[#allocation3] sm:$0xf]
    %v61 = vld [vmem:[#allocation3 + $0x4] sm:$0xf]
    %v62 = vld [vmem:[#allocation3 + $0x8] sm:$0xf]
    %v63 = vld [vmem:[#allocation3 + $0xc] sm:$0xf]
    %v64 = vld [vmem:[#allocation3 + $0x10] sm:$0xf]
    %v65 = vld [vmem:[#allocation3 + $0x14] sm:$0xf]
    %v66 = vld [vmem:[#allocation3 + $0x18] sm:$0xf]
    %v67 = vld [vmem:[#allocation3 + $0x1c] sm:$0xf]
    %v68 = vld [vmem:[#allocation6] sm:$0xf]
    %v69 = vld [vmem:[#allocation6 + $0x4] sm:$0xf]
    %v70 = vld [vmem:[#allocation6 + $0x8] sm:$0xf]
    %v71 = vld [vmem:[#allocation6 + $0xc] sm:$0xf]
    %v72 = vld [vmem:[#allocation6 + $0x10] sm:$0xf]
    %v73 = vld [vmem:[#allocation6 + $0x14] sm:$0xf]
    %v74 = vld [vmem:[#allocation6 + $0x18] sm:$0xf]
    %v75 = vld [vmem:[#allocation6 + $0x1c] sm:$0xf]
    %v76 = vunpack.c.l.bf16 %v68
    %v77 = vunpack.c.l.bf16 %v69
    %v78 = vunpack.c.l.bf16 %v70
    %v79 = vunpack.c.l.bf16 %v71
    %v80 = vunpack.c.l.bf16 %v72
    %v81 = vunpack.c.l.bf16 %v73
    %v82 = vunpack.c.l.bf16 %v74
    %v83 = vunpack.c.l.bf16 %v75
    %84 = vst [vmem:[#allocation2] sm:$0xff] %v76
    %85 = vst [vmem:[#allocation2 + $0x8] sm:$0xff] %v77
    %86 = vst [vmem:[#allocation2 + $0x10] sm:$0xff] %v78
    %87 = vst [vmem:[#allocation2 + $0x18] sm:$0xff] %v79
    %88 = vst [vmem:[#allocation2 + $0x20] sm:$0xff] %v80
    %89 = vst [vmem:[#allocation2 + $0x28] sm:$0xff] %v81
    %90 = vst [vmem:[#allocation2 + $0x30] sm:$0xff] %v82
    %91 = vst [vmem:[#allocation2 + $0x38] sm:$0xff] %v83
    %v92 = vld [vmem:[#allocation2] sm:$0xff]
    %v93 = vld [vmem:[#allocation2 + $0x8] sm:$0xff]
    %v94 = vld [vmem:[#allocation2 + $0x10] sm:$0xff]
    %v95 = vld [vmem:[#allocation2 + $0x18] sm:$0xff]
    %v96 = vld [vmem:[#allocation2 + $0x20] sm:$0xff]
    %v97 = vld [vmem:[#allocation2 + $0x28] sm:$0xff]
    %v98 = vld [vmem:[#allocation2 + $0x30] sm:$0xff]
    %v99 = vld [vmem:[#allocation2 + $0x38] sm:$0xff]
    %v100 = vpack.c.bf16 %v93, %v92
    %v101 = vpack.c.bf16 %v95, %v94
    %v102 = vpack.c.bf16 %v97, %v96
    %v103 = vpack.c.bf16 %v99, %v98
    %v104 = vld [vmem:[#allocation8] sm:$0xf]
    %v105 = vld [vmem:[#allocation8 + $0x4] sm:$0xf]
    %v106 = vld [vmem:[#allocation8 + $0x8] sm:$0xf]
    %v107 = vld [vmem:[#allocation8 + $0xc] sm:$0xf]
    %v108 = vld [vmem:[#allocation8 + $0x10] sm:$0xf]
    %v109 = vld [vmem:[#allocation8 + $0x14] sm:$0xf]
    %v110 = vld [vmem:[#allocation8 + $0x18] sm:$0xf]
    %v111 = vld [vmem:[#allocation8 + $0x1c] sm:$0xf]
    %v112 = vld [vmem:[#allocation8 + $0x20] sm:$0xf]
    %v113 = vld [vmem:[#allocation8 + $0x24] sm:$0xf]
    %v114 = vld [vmem:[#allocation8 + $0x28] sm:$0xf]
    %v115 = vld [vmem:[#allocation8 + $0x2c] sm:$0xf]
    %v116 = vld [vmem:[#allocation8 + $0x30] sm:$0xf]
    %v117 = vld [vmem:[#allocation8 + $0x34] sm:$0xf]
    %v118 = vld [vmem:[#allocation8 + $0x38] sm:$0xf]
    %v119 = vld [vmem:[#allocation8 + $0x3c] sm:$0xf]
    %v136 = vunpack.c.l.b16 %v104
    %v137 = vunpack.c.l.b16 %v105
    %v138 = vunpack.c.l.b16 %v106
    %v139 = vunpack.c.l.b16 %v107
    %v140 = vunpack.c.l.b16 %v108
    %v141 = vunpack.c.l.b16 %v109
    %v142 = vunpack.c.l.b16 %v110
    %v143 = vunpack.c.l.b16 %v111
    %v144 = vunpack.c.l.b16 %v112
    %v145 = vunpack.c.l.b16 %v113
    %v146 = vunpack.c.l.b16 %v114
    %v147 = vunpack.c.l.b16 %v115
    %v148 = vunpack.c.l.b16 %v116
    %v149 = vunpack.c.l.b16 %v117
    %v150 = vunpack.c.l.b16 %v118
    %v151 = vunpack.c.l.b16 %v119
    %v152 = vpack.c.b16 %v137, %v136
    %v153 = vpack.c.b16 %v139, %v138
    %v154 = vpack.c.b16 %v141, %v140
    %v155 = vpack.c.b16 %v143, %v142
    %v156 = vpack.c.b16 %v145, %v144
    %v157 = vpack.c.b16 %v147, %v146
    %v158 = vpack.c.b16 %v149, %v148
    %v159 = vpack.c.b16 %v151, %v150
    %168 = vmatprep.subr.bf16.mxu0 0
    %169 = vmatpush1.bf16.msra.mxu0 %v152
    %170 = vmatprep.subr.bf16.mxu0 0
    %171 = vmatpush1.bf16.msra.mxu0 %v153
    %172 = vmatprep.subr.bf16.mxu0 0
    %173 = vmatpush1.bf16.msra.mxu0 %v154
    %174 = vmatprep.subr.bf16.mxu0 0
    %175 = vmatpush1.bf16.msra.mxu0 %v155
    %176 = vmatprep.subr.bf16.mxu0 0
    %177 = vmatpush1.bf16.msra.mxu0 %v156
    %178 = vmatprep.subr.bf16.mxu0 0
    %179 = vmatpush1.bf16.msra.mxu0 %v157
    %180 = vmatprep.subr.bf16.mxu0 0
    %181 = vmatpush1.bf16.msra.mxu0 %v158
    %182 = vmatprep.subr.bf16.mxu0 0
    %183 = vmatpush1.bf16.msra.mxu0 %v159
    %184 = vmatprep.subr.bf16.mxu0 0
    %185 = vmatpush1.bf16.msra.mxu0 0
    %186 = vmatprep.subr.bf16.mxu0 0
    %187 = vmatpush1.bf16.msra.mxu0 0
    %188 = vmatprep.subr.bf16.mxu0 0
    %189 = vmatpush1.bf16.msra.mxu0 0
    %190 = vmatprep.subr.bf16.mxu0 0
    %191 = vmatpush1.bf16.msra.mxu0 0
    %192 = vmatprep.subr.bf16.mxu0 0
    %193 = vmatpush1.bf16.msra.mxu0 0
    %194 = vmatprep.subr.bf16.mxu0 0
    %195 = vmatpush1.bf16.msra.mxu0 0
    %196 = vmatprep.subr.bf16.mxu0 0
    %197 = vmatpush1.bf16.msra.mxu0 0
    %198 = vmatprep.subr.bf16.mxu0 0
    %199 = vmatpush1.bf16.msra.mxu0 0
    %200 = vmatprep.mubr.bf16.mxu0 0
    %201 = vmatmul.mubr.bf16.gmra.mrb[0].mxu0 %v100
    %v202 = vpop.f32.mrb[0].mxu0
    %v203 = vadd.f32 0.0, %v202
    %v204 = vpop.f32.mrb[0].mxu0
    %v205 = vpop.f32.mrb[0].mxu0
    %v206 = vadd.f32 0.0, %v205
    %v207 = vpop.f32.mrb[0].mxu0
    %208 = vmatprep.mubr.bf16.mxu0 0
    %209 = vmatmul.mubr.bf16.gmra.mrb[0].mxu0 %v101
    %v210 = vpop.f32.mrb[0].mxu0
    %v211 = vadd.f32 0.0, %v210
    %v212 = vpop.f32.mrb[0].mxu0
    %v213 = vpop.f32.mrb[0].mxu0
    %v214 = vadd.f32 0.0, %v213
    %v215 = vpop.f32.mrb[0].mxu0
    %216 = vmatprep.mubr.bf16.mxu0 0
    %217 = vmatmul.mubr.bf16.gmra.mrb[0].mxu0 %v102
    %v218 = vpop.f32.mrb[0].mxu0
    %v219 = vadd.f32 0.0, %v218
    %v220 = vpop.f32.mrb[0].mxu0
    %v221 = vpop.f32.mrb[0].mxu0
    %v222 = vadd.f32 0.0, %v221
    %v223 = vpop.f32.mrb[0].mxu0
    %224 = vmatprep.mubr.bf16.mxu0 0
    %225 = vmatmul.mubr.bf16.gmra.mrb[0].mxu0 %v103
    %v226 = vpop.f32.mrb[0].mxu0
    %v227 = vadd.f32 0.0, %v226
    %v228 = vpop.f32.mrb[0].mxu0
    %v229 = vpop.f32.mrb[0].mxu0
    %v230 = vadd.f32 0.0, %v229
    %v231 = vpop.f32.mrb[0].mxu0
    %232 = vdwg.mxu0
    %v233 = vpack.c.bf16 %v206, %v203
    %v234 = vpack.c.bf16 %v214, %v211
    %v235 = vpack.c.bf16 %v222, %v219
    %v236 = vpack.c.bf16 %v230, %v227
    %v237 = vld [vmem:[%s3] sm:$0x1]
    %v239 = vlaneseq
    %v240 = vshrl.u32 %v239, 7
    %v241 = vsub.s32 0, %v240
    %v242 = vrot.slane %v237, %v241
    %v252 = vunpack.c.l.b16 %v60
    %v253 = vunpack.c.l.b16 %v61
    %v254 = vunpack.c.l.b16 %v62
    %v255 = vunpack.c.l.b16 %v63
    %v256 = vunpack.c.l.b16 %v64
    %v257 = vunpack.c.l.b16 %v65
    %v258 = vunpack.c.l.b16 %v66
    %v259 = vunpack.c.l.b16 %v67
    %v260 = vpack.c.b16 %v253, %v252
    %v261 = vpack.c.b16 %v255, %v254
    %v262 = vpack.c.b16 %v257, %v256
    %v263 = vpack.c.b16 %v259, %v258
    %vm264 = vcmask 523264
    %v266 = vsel %vm264, %v260, 0
    %v269 = vsel %vm264, %v261, 0
    %v272 = vsel %vm264, %v262, 0
    %v275 = vsel %vm264, %v263, 0
    %277 = vmatprep.subr.bf16.mxu0 0
    %278 = vmatpush1.bf16.msra.mxu0 %v233
    %279 = vmatprep.subr.bf16.mxu0 0
    %280 = vmatpush1.bf16.msra.mxu0 %v234
    %281 = vmatprep.subr.bf16.mxu0 0
    %282 = vmatpush1.bf16.msra.mxu0 %v235
    %283 = vmatprep.subr.bf16.mxu0 0
    %284 = vmatpush1.bf16.msra.mxu0 %v236
    %285 = vmatprep.subr.bf16.mxu0 0
    %286 = vmatpush1.bf16.msra.mxu0 0
    %287 = vmatprep.subr.bf16.mxu0 0
    %288 = vmatpush1.bf16.msra.mxu0 0
    %289 = vmatprep.subr.bf16.mxu0 0
    %290 = vmatpush1.bf16.msra.mxu0 0
    %291 = vmatprep.subr.bf16.mxu0 0
    %292 = vmatpush1.bf16.msra.mxu0 0
    %293 = vmatprep.subr.bf16.mxu0 0
    %294 = vmatpush1.bf16.msra.mxu0 0
    %295 = vmatprep.subr.bf16.mxu0 0
    %296 = vmatpush1.bf16.msra.mxu0 0
    %297 = vmatprep.subr.bf16.mxu0 0
    %298 = vmatpush1.bf16.msra.mxu0 0
    %299 = vmatprep.subr.bf16.mxu0 0
    %300 = vmatpush1.bf16.msra.mxu0 0
    %301 = vmatprep.subr.bf16.mxu0 0
    %302 = vmatpush1.bf16.msra.mxu0 0
    %303 = vmatprep.subr.bf16.mxu0 0
    %304 = vmatpush1.bf16.msra.mxu0 0
    %305 = vmatprep.subr.bf16.mxu0 0
    %306 = vmatpush1.bf16.msra.mxu0 0
    %307 = vmatprep.subr.bf16.mxu0 0
    %308 = vmatpush1.bf16.msra.mxu0 0
    %309 = vmatprep.mubr.bf16.mxu0 0
    %310 = vmatmul.mubr.bf16.gmra.mrb[0].mxu0 %v266
    %v311 = vpop.f32.mrb[0].mxu0
    %v312 = vadd.f32 %v242, %v311
    %v313 = vpop.f32.mrb[0].mxu0
    %v314 = vpop.f32.mrb[0].mxu0
    %v315 = vadd.f32 %v242, %v314
    %v316 = vpop.f32.mrb[0].mxu0
    %317 = vmatprep.mubr.bf16.mxu0 0
    %318 = vmatmul.mubr.bf16.gmra.mrb[0].mxu0 %v269
    %v319 = vpop.f32.mrb[0].mxu0
    %v320 = vadd.f32 %v242, %v319
    %v321 = vpop.f32.mrb[0].mxu0
    %v322 = vpop.f32.mrb[0].mxu0
    %v323 = vadd.f32 %v242, %v322
    %v324 = vpop.f32.mrb[0].mxu0
    %325 = vmatprep.mubr.bf16.mxu0 0
    %326 = vmatmul.mubr.bf16.gmra.mrb[0].mxu0 %v272
    %v327 = vpop.f32.mrb[0].mxu0
    %v328 = vadd.f32 %v242, %v327
    %v329 = vpop.f32.mrb[0].mxu0
    %v330 = vpop.f32.mrb[0].mxu0
    %v331 = vadd.f32 %v242, %v330
    %v332 = vpop.f32.mrb[0].mxu0
    %333 = vmatprep.mubr.bf16.mxu0 0
    %334 = vmatmul.mubr.bf16.gmra.mrb[0].mxu0 %v275
    %v335 = vpop.f32.mrb[0].mxu0
    %v336 = vadd.f32 %v242, %v335
    %v337 = vpop.f32.mrb[0].mxu0
    %v338 = vpop.f32.mrb[0].mxu0
    %v339 = vadd.f32 %v242, %v338
    %v340 = vpop.f32.mrb[0].mxu0
    %341 = vdwg.mxu0
    %v342 = vmax.f32 %v312, 0.0
    %v343 = vmax.f32 %v315, 0.0
    %v344 = vmax.f32 %v320, 0.0
    %v345 = vmax.f32 %v323, 0.0
    %v346 = vmax.f32 %v328, 0.0
    %v347 = vmax.f32 %v331, 0.0
    %v348 = vmax.f32 %v336, 0.0
    %v349 = vmax.f32 %v339, 0.0
    %350 = vst [vmem:[#allocation2] sm:$0xff] %v342
    %351 = vst [vmem:[#allocation2 + $0x8] sm:$0xff] %v343
    %352 = vst [vmem:[#allocation2 + $0x10] sm:$0xff] %v344
    %353 = vst [vmem:[#allocation2 + $0x18] sm:$0xff] %v345
    %354 = vst [vmem:[#allocation2 + $0x20] sm:$0xff] %v346
    %355 = vst [vmem:[#allocation2 + $0x28] sm:$0xff] %v347
    %356 = vst [vmem:[#allocation2 + $0x30] sm:$0xff] %v348
    %357 = vst [vmem:[#allocation2 + $0x38] sm:$0xff] %v349
    %v358 = vld [vmem:[#allocation2] sm:$0xff]
    %v359 = vld [vmem:[#allocation2 + $0x8] sm:$0xff]
    %v360 = vld [vmem:[#allocation2 + $0x10] sm:$0xff]
    %v361 = vld [vmem:[#allocation2 + $0x18] sm:$0xff]
    %v362 = vld [vmem:[#allocation2 + $0x20] sm:$0xff]
    %v363 = vld [vmem:[#allocation2 + $0x28] sm:$0xff]
    %v364 = vld [vmem:[#allocation2 + $0x30] sm:$0xff]
    %v365 = vld [vmem:[#allocation2 + $0x38] sm:$0xff]
    %v366 = vpack.c.bf16 %v359, %v358
    %v367 = vpack.c.bf16 %v361, %v360
    %v368 = vpack.c.bf16 %v363, %v362
    %v369 = vpack.c.bf16 %v365, %v364
    %s370 = scalar_lea.vmem [#allocation8], 64
    %v371 = vld [vmem:[%s370] sm:$0xf]
    %v372 = vld [vmem:[%s370 + $0x4] sm:$0xf]
    %v373 = vld [vmem:[%s370 + $0x8] sm:$0xf]
    %v374 = vld [vmem:[%s370 + $0xc] sm:$0xf]
    %v375 = vld [vmem:[%s370 + $0x10] sm:$0xf]
    %v376 = vld [vmem:[%s370 + $0x14] sm:$0xf]
    %v377 = vld [vmem:[%s370 + $0x18] sm:$0xf]
    %v378 = vld [vmem:[%s370 + $0x1c] sm:$0xf]
    %v379 = vld [vmem:[%s370 + $0x20] sm:$0xf]
    %v380 = vld [vmem:[%s370 + $0x24] sm:$0xf]
    %v381 = vld [vmem:[%s370 + $0x28] sm:$0xf]
    %v382 = vld [vmem:[%s370 + $0x2c] sm:$0xf]
    %v383 = vld [vmem:[%s370 + $0x30] sm:$0xf]
    %v384 = vld [vmem:[%s370 + $0x34] sm:$0xf]
    %v385 = vld [vmem:[%s370 + $0x38] sm:$0xf]
    %v386 = vld [vmem:[%s370 + $0x3c] sm:$0xf]
    %v403 = vunpack.c.l.b16 %v371
    %v404 = vunpack.c.l.b16 %v372
    %v405 = vunpack.c.l.b16 %v373
    %v406 = vunpack.c.l.b16 %v374
    %v407 = vunpack.c.l.b16 %v375
    %v408 = vunpack.c.l.b16 %v376
    %v409 = vunpack.c.l.b16 %v377
    %v410 = vunpack.c.l.b16 %v378
    %v411 = vunpack.c.l.b16 %v379
    %v412 = vunpack.c.l.b16 %v380
    %v413 = vunpack.c.l.b16 %v381
    %v414 = vunpack.c.l.b16 %v382
    %v415 = vunpack.c.l.b16 %v383
    %v416 = vunpack.c.l.b16 %v384
    %v417 = vunpack.c.l.b16 %v385
    %v418 = vunpack.c.l.b16 %v386
    %v419 = vpack.c.b16 %v404, %v403
    %v420 = vpack.c.b16 %v406, %v405
    %v421 = vpack.c.b16 %v408, %v407
    %v422 = vpack.c.b16 %v410, %v409
    %v423 = vpack.c.b16 %v412, %v411
    %v424 = vpack.c.b16 %v414, %v413
    %v425 = vpack.c.b16 %v416, %v415
    %v426 = vpack.c.b16 %v418, %v417
    %435 = vmatprep.subr.bf16.mxu0 0
    %436 = vmatpush1.bf16.msra.mxu0 %v419
    %437 = vmatprep.subr.bf16.mxu0 0
    %438 = vmatpush1.bf16.msra.mxu0 %v420
    %439 = vmatprep.subr.bf16.mxu0 0
    %440 = vmatpush1.bf16.msra.mxu0 %v421
    %441 = vmatprep.subr.bf16.mxu0 0
    %442 = vmatpush1.bf16.msra.mxu0 %v422
    %443 = vmatprep.subr.bf16.mxu0 0
    %444 = vmatpush1.bf16.msra.mxu0 %v423
    %445 = vmatprep.subr.bf16.mxu0 0
    %446 = vmatpush1.bf16.msra.mxu0 %v424
    %447 = vmatprep.subr.bf16.mxu0 0
    %448 = vmatpush1.bf16.msra.mxu0 %v425
    %449 = vmatprep.subr.bf16.mxu0 0
    %450 = vmatpush1.bf16.msra.mxu0 %v426
    %451 = vmatprep.subr.bf16.mxu0 0
    %452 = vmatpush1.bf16.msra.mxu0 0
    %453 = vmatprep.subr.bf16.mxu0 0
    %454 = vmatpush1.bf16.msra.mxu0 0
    %455 = vmatprep.subr.bf16.mxu0 0
    %456 = vmatpush1.bf16.msra.mxu0 0
    %457 = vmatprep.subr.bf16.mxu0 0
    %458 = vmatpush1.bf16.msra.mxu0 0
    %459 = vmatprep.subr.bf16.mxu0 0
    %460 = vmatpush1.bf16.msra.mxu0 0
    %461 = vmatprep.subr.bf16.mxu0 0
    %462 = vmatpush1.bf16.msra.mxu0 0
    %463 = vmatprep.subr.bf16.mxu0 0
    %464 = vmatpush1.bf16.msra.mxu0 0
    %465 = vmatprep.subr.bf16.mxu0 0
    %466 = vmatpush1.bf16.msra.mxu0 0
    %467 = vmatprep.mubr.bf16.mxu0 0
    %468 = vmatmul.mubr.bf16.gmra.mrb[0].mxu0 %v366
    %v469 = vpop.f32.mrb[0].mxu0
    %v470 = vadd.f32 0.0, %v469
    %v471 = vpop.f32.mrb[0].mxu0
    %v472 = vpop.f32.mrb[0].mxu0
    %v473 = vadd.f32 0.0, %v472
    %v474 = vpop.f32.mrb[0].mxu0
    %475 = vmatprep.mubr.bf16.mxu0 0
    %476 = vmatmul.mubr.bf16.gmra.mrb[0].mxu0 %v367
    %v477 = vpop.f32.mrb[0].mxu0
    %v478 = vadd.f32 0.0, %v477
    %v479 = vpop.f32.mrb[0].mxu0
    %v480 = vpop.f32.mrb[0].mxu0
    %v481 = vadd.f32 0.0, %v480
    %v482 = vpop.f32.mrb[0].mxu0
    %483 = vmatprep.mubr.bf16.mxu0 0
    %484 = vmatmul.mubr.bf16.gmra.mrb[0].mxu0 %v368
    %v485 = vpop.f32.mrb[0].mxu0
    %v486 = vadd.f32 0.0, %v485
    %v487 = vpop.f32.mrb[0].mxu0
    %v488 = vpop.f32.mrb[0].mxu0
    %v489 = vadd.f32 0.0, %v488
    %v490 = vpop.f32.mrb[0].mxu0
    %491 = vmatprep.mubr.bf16.mxu0 0
    %492 = vmatmul.mubr.bf16.gmra.mrb[0].mxu0 %v369
    %v493 = vpop.f32.mrb[0].mxu0
    %v494 = vadd.f32 0.0, %v493
    %v495 = vpop.f32.mrb[0].mxu0
    %v496 = vpop.f32.mrb[0].mxu0
    %v497 = vadd.f32 0.0, %v496
    %v498 = vpop.f32.mrb[0].mxu0
    %499 = vdwg.mxu0
    %v500 = vpack.c.bf16 %v473, %v470
    %v501 = vpack.c.bf16 %v481, %v478
    %v502 = vpack.c.bf16 %v489, %v486
    %v503 = vpack.c.bf16 %v497, %v494
    %s504 = scalar_lea.vmem %s3, 1
    %v505 = vld [vmem:[%s504] sm:$0x1]
    %v507 = vlaneseq
    %v508 = vshrl.u32 %v507, 7
    %v509 = vsub.s32 0, %v508
    %v510 = vrot.slane %v505, %v509
    %512 = vmatprep.subr.bf16.mxu0 0
    %513 = vmatpush1.bf16.msra.mxu0 %v500
    %514 = vmatprep.subr.bf16.mxu0 0
    %515 = vmatpush1.bf16.msra.mxu0 %v501
    %516 = vmatprep.subr.bf16.mxu0 0
    %517 = vmatpush1.bf16.msra.mxu0 %v502
    %518 = vmatprep.subr.bf16.mxu0 0
    %519 = vmatpush1.bf16.msra.mxu0 %v503
    %520 = vmatprep.subr.bf16.mxu0 0
    %521 = vmatpush1.bf16.msra.mxu0 0
    %522 = vmatprep.subr.bf16.mxu0 0
    %523 = vmatpush1.bf16.msra.mxu0 0
    %524 = vmatprep.subr.bf16.mxu0 0
    %525 = vmatpush1.bf16.msra.mxu0 0
    %526 = vmatprep.subr.bf16.mxu0 0
    %527 = vmatpush1.bf16.msra.mxu0 0
    %528 = vmatprep.subr.bf16.mxu0 0
    %529 = vmatpush1.bf16.msra.mxu0 0
    %530 = vmatprep.subr.bf16.mxu0 0
    %531 = vmatpush1.bf16.msra.mxu0 0
    %532 = vmatprep.subr.bf16.mxu0 0
    %533 = vmatpush1.bf16.msra.mxu0 0
    %534 = vmatprep.subr.bf16.mxu0 0
    %535 = vmatpush1.bf16.msra.mxu0 0
    %536 = vmatprep.subr.bf16.mxu0 0
    %537 = vmatpush1.bf16.msra.mxu0 0
    %538 = vmatprep.subr.bf16.mxu0 0
    %539 = vmatpush1.bf16.msra.mxu0 0
    %540 = vmatprep.subr.bf16.mxu0 0
    %541 = vmatpush1.bf16.msra.mxu0 0
    %542 = vmatprep.subr.bf16.mxu0 0
    %543 = vmatpush1.bf16.msra.mxu0 0
    %544 = vmatprep.mubr.bf16.mxu0 0
    %545 = vmatmul.mubr.bf16.gmra.mrb[0].mxu0 %v266
    %v546 = vpop.f32.mrb[0].mxu0
    %v547 = vadd.f32 %v510, %v546
    %v548 = vpop.f32.mrb[0].mxu0
    %v549 = vpop.f32.mrb[0].mxu0
    %v550 = vadd.f32 %v510, %v549
    %v551 = vpop.f32.mrb[0].mxu0
    %552 = vmatprep.mubr.bf16.mxu0 0
    %553 = vmatmul.mubr.bf16.gmra.mrb[0].mxu0 %v269
    %v554 = vpop.f32.mrb[0].mxu0
    %v555 = vadd.f32 %v510, %v554
    %v556 = vpop.f32.mrb[0].mxu0
    %v557 = vpop.f32.mrb[0].mxu0
    %v558 = vadd.f32 %v510, %v557
    %v559 = vpop.f32.mrb[0].mxu0
    %560 = vmatprep.mubr.bf16.mxu0 0
    %561 = vmatmul.mubr.bf16.gmra.mrb[0].mxu0 %v272
    %v562 = vpop.f32.mrb[0].mxu0
    %v563 = vadd.f32 %v510, %v562
    %v564 = vpop.f32.mrb[0].mxu0
    %v565 = vpop.f32.mrb[0].mxu0
    %v566 = vadd.f32 %v510, %v565
    %v567 = vpop.f32.mrb[0].mxu0
    %568 = vmatprep.mubr.bf16.mxu0 0
    %569 = vmatmul.mubr.bf16.gmra.mrb[0].mxu0 %v275
    %v570 = vpop.f32.mrb[0].mxu0
    %v571 = vadd.f32 %v510, %v570
    %v572 = vpop.f32.mrb[0].mxu0
    %v573 = vpop.f32.mrb[0].mxu0
    %v574 = vadd.f32 %v510, %v573
    %v575 = vpop.f32.mrb[0].mxu0
    %576 = vdwg.mxu0
    %v577 = vmax.f32 %v547, 0.0
    %v578 = vmax.f32 %v550, 0.0
    %v579 = vmax.f32 %v555, 0.0
    %v580 = vmax.f32 %v558, 0.0
    %v581 = vmax.f32 %v563, 0.0
    %v582 = vmax.f32 %v566, 0.0
    %v583 = vmax.f32 %v571, 0.0
    %v584 = vmax.f32 %v574, 0.0
    %585 = vst [vmem:[#allocation2] sm:$0xff] %v577
    %586 = vst [vmem:[#allocation2 + $0x8] sm:$0xff] %v578
    %587 = vst [vmem:[#allocation2 + $0x10] sm:$0xff] %v579
    %588 = vst [vmem:[#allocation2 + $0x18] sm:$0xff] %v580
    %589 = vst [vmem:[#allocation2 + $0x20] sm:$0xff] %v581
    %590 = vst [vmem:[#allocation2 + $0x28] sm:$0xff] %v582
    %591 = vst [vmem:[#allocation2 + $0x30] sm:$0xff] %v583
    %592 = vst [vmem:[#allocation2 + $0x38] sm:$0xff] %v584
    %v593 = vld [vmem:[#allocation2] sm:$0xff]
    %v594 = vld [vmem:[#allocation2 + $0x8] sm:$0xff]
    %v595 = vld [vmem:[#allocation2 + $0x10] sm:$0xff]
    %v596 = vld [vmem:[#allocation2 + $0x18] sm:$0xff]
    %v597 = vld [vmem:[#allocation2 + $0x20] sm:$0xff]
    %v598 = vld [vmem:[#allocation2 + $0x28] sm:$0xff]
    %v599 = vld [vmem:[#allocation2 + $0x30] sm:$0xff]
    %v600 = vld [vmem:[#allocation2 + $0x38] sm:$0xff]
    %v601 = vpack.c.bf16 %v594, %v593
    %v602 = vpack.c.bf16 %v596, %v595
    %v603 = vpack.c.bf16 %v598, %v597
    %v604 = vpack.c.bf16 %v600, %v599
    %s605 = scalar_lea.vmem [#allocation8], 128
    %v606 = vld [vmem:[%s605] sm:$0xf]
    %v607 = vld [vmem:[%s605 + $0x4] sm:$0xf]
    %v608 = vld [vmem:[%s605 + $0x8] sm:$0xf]
    %v609 = vld [vmem:[%s605 + $0xc] sm:$0xf]
    %v610 = vld [vmem:[%s605 + $0x10] sm:$0xf]
    %v611 = vld [vmem:[%s605 + $0x14] sm:$0xf]
    %v612 = vld [vmem:[%s605 + $0x18] sm:$0xf]
    %v613 = vld [vmem:[%s605 + $0x1c] sm:$0xf]
    %v614 = vld [vmem:[%s605 + $0x20] sm:$0xf]
    %v615 = vld [vmem:[%s605 + $0x24] sm:$0xf]
    %v616 = vld [vmem:[%s605 + $0x28] sm:$0xf]
    %v617 = vld [vmem:[%s605 + $0x2c] sm:$0xf]
    %v618 = vld [vmem:[%s605 + $0x30] sm:$0xf]
    %v619 = vld [vmem:[%s605 + $0x34] sm:$0xf]
    %v620 = vld [vmem:[%s605 + $0x38] sm:$0xf]
    %v621 = vld [vmem:[%s605 + $0x3c] sm:$0xf]
    %v638 = vunpack.c.l.b16 %v606
    %v639 = vunpack.c.l.b16 %v607
    %v640 = vunpack.c.l.b16 %v608
    %v641 = vunpack.c.l.b16 %v609
    %v642 = vunpack.c.l.b16 %v610
    %v643 = vunpack.c.l.b16 %v611
    %v644 = vunpack.c.l.b16 %v612
    %v645 = vunpack.c.l.b16 %v613
    %v646 = vunpack.c.l.b16 %v614
    %v647 = vunpack.c.l.b16 %v615
    %v648 = vunpack.c.l.b16 %v616
    %v649 = vunpack.c.l.b16 %v617
    %v650 = vunpack.c.l.b16 %v618
    %v651 = vunpack.c.l.b16 %v619
    %v652 = vunpack.c.l.b16 %v620
    %v653 = vunpack.c.l.b16 %v621
    %v654 = vpack.c.b16 %v639, %v638
    %v655 = vpack.c.b16 %v641, %v640
    %v656 = vpack.c.b16 %v643, %v642
    %v657 = vpack.c.b16 %v645, %v644
    %v658 = vpack.c.b16 %v647, %v646
    %v659 = vpack.c.b16 %v649, %v648
    %v660 = vpack.c.b16 %v651, %v650
    %v661 = vpack.c.b16 %v653, %v652
    %670 = vmatprep.subr.bf16.mxu0 0
    %671 = vmatpush1.bf16.msra.mxu0 %v654
    %672 = vmatprep.subr.bf16.mxu0 0
    %673 = vmatpush1.bf16.msra.mxu0 %v655
    %674 = vmatprep.subr.bf16.mxu0 0
    %675 = vmatpush1.bf16.msra.mxu0 %v656
    %676 = vmatprep.subr.bf16.mxu0 0
    %677 = vmatpush1.bf16.msra.mxu0 %v657
    %678 = vmatprep.subr.bf16.mxu0 0
    %679 = vmatpush1.bf16.msra.mxu0 %v658
    %680 = vmatprep.subr.bf16.mxu0 0
    %681 = vmatpush1.bf16.msra.mxu0 %v659
    %682 = vmatprep.subr.bf16.mxu0 0
    %683 = vmatpush1.bf16.msra.mxu0 %v660
    %684 = vmatprep.subr.bf16.mxu0 0
    %685 = vmatpush1.bf16.msra.mxu0 %v661
    %686 = vmatprep.subr.bf16.mxu0 0
    %687 = vmatpush1.bf16.msra.mxu0 0
    %688 = vmatprep.subr.bf16.mxu0 0
    %689 = vmatpush1.bf16.msra.mxu0 0
    %690 = vmatprep.subr.bf16.mxu0 0
    %691 = vmatpush1.bf16.msra.mxu0 0
    %692 = vmatprep.subr.bf16.mxu0 0
    %693 = vmatpush1.bf16.msra.mxu0 0
    %694 = vmatprep.subr.bf16.mxu0 0
    %695 = vmatpush1.bf16.msra.mxu0 0
    %696 = vmatprep.subr.bf16.mxu0 0
    %697 = vmatpush1.bf16.msra.mxu0 0
    %698 = vmatprep.subr.bf16.mxu0 0
    %699 = vmatpush1.bf16.msra.mxu0 0
    %700 = vmatprep.subr.bf16.mxu0 0
    %701 = vmatpush1.bf16.msra.mxu0 0
    %702 = vmatprep.mubr.bf16.mxu0 0
    %703 = vmatmul.mubr.bf16.gmra.mrb[0].mxu0 %v601
    %v704 = vpop.f32.mrb[0].mxu0
    %v705 = vadd.f32 0.0, %v704
    %v706 = vpop.f32.mrb[0].mxu0
    %v707 = vpop.f32.mrb[0].mxu0
    %v708 = vadd.f32 0.0, %v707
    %v709 = vpop.f32.mrb[0].mxu0
    %710 = vmatprep.mubr.bf16.mxu0 0
    %711 = vmatmul.mubr.bf16.gmra.mrb[0].mxu0 %v602
    %v712 = vpop.f32.mrb[0].mxu0
    %v713 = vadd.f32 0.0, %v712
    %v714 = vpop.f32.mrb[0].mxu0
    %v715 = vpop.f32.mrb[0].mxu0
    %v716 = vadd.f32 0.0, %v715
    %v717 = vpop.f32.mrb[0].mxu0
    %718 = vmatprep.mubr.bf16.mxu0 0
    %719 = vmatmul.mubr.bf16.gmra.mrb[0].mxu0 %v603
    %v720 = vpop.f32.mrb[0].mxu0
    %v721 = vadd.f32 0.0, %v720
    %v722 = vpop.f32.mrb[0].mxu0
    %v723 = vpop.f32.mrb[0].mxu0
    %v724 = vadd.f32 0.0, %v723
    %v725 = vpop.f32.mrb[0].mxu0
    %726 = vmatprep.mubr.bf16.mxu0 0
    %727 = vmatmul.mubr.bf16.gmra.mrb[0].mxu0 %v604
    %v728 = vpop.f32.mrb[0].mxu0
    %v729 = vadd.f32 0.0, %v728
    %v730 = vpop.f32.mrb[0].mxu0
    %v731 = vpop.f32.mrb[0].mxu0
    %v732 = vadd.f32 0.0, %v731
    %v733 = vpop.f32.mrb[0].mxu0
    %734 = vdwg.mxu0
    %v735 = vpack.c.bf16 %v708, %v705
    %v736 = vpack.c.bf16 %v716, %v713
    %v737 = vpack.c.bf16 %v724, %v721
    %v738 = vpack.c.bf16 %v732, %v729
    %s739 = scalar_lea.vmem %s3, 2
    %v740 = vld [vmem:[%s739] sm:$0x1]
    %v742 = vlaneseq
    %v743 = vshrl.u32 %v742, 7
    %v744 = vsub.s32 0, %v743
    %v745 = vrot.slane %v740, %v744
    %747 = vmatprep.subr.bf16.mxu0 0
    %748 = vmatpush1.bf16.msra.mxu0 %v735
    %749 = vmatprep.subr.bf16.mxu0 0
    %750 = vmatpush1.bf16.msra.mxu0 %v736
    %751 = vmatprep.subr.bf16.mxu0 0
    %752 = vmatpush1.bf16.msra.mxu0 %v737
    %753 = vmatprep.subr.bf16.mxu0 0
    %754 = vmatpush1.bf16.msra.mxu0 %v738
    %755 = vmatprep.subr.bf16.mxu0 0
    %756 = vmatpush1.bf16.msra.mxu0 0
    %757 = vmatprep.subr.bf16.mxu0 0
    %758 = vmatpush1.bf16.msra.mxu0 0
    %759 = vmatprep.subr.bf16.mxu0 0
    %760 = vmatpush1.bf16.msra.mxu0 0
    %761 = vmatprep.subr.bf16.mxu0 0
    %762 = vmatpush1.bf16.msra.mxu0 0
    %763 = vmatprep.subr.bf16.mxu0 0
    %764 = vmatpush1.bf16.msra.mxu0 0
    %765 = vmatprep.subr.bf16.mxu0 0
    %766 = vmatpush1.bf16.msra.mxu0 0
    %767 = vmatprep.subr.bf16.mxu0 0
    %768 = vmatpush1.bf16.msra.mxu0 0
    %769 = vmatprep.subr.bf16.mxu0 0
    %770 = vmatpush1.bf16.msra.mxu0 0
    %771 = vmatprep.subr.bf16.mxu0 0
    %772 = vmatpush1.bf16.msra.mxu0 0
    %773 = vmatprep.subr.bf16.mxu0 0
    %774 = vmatpush1.bf16.msra.mxu0 0
    %775 = vmatprep.subr.bf16.mxu0 0
    %776 = vmatpush1.bf16.msra.mxu0 0
    %777 = vmatprep.subr.bf16.mxu0 0
    %778 = vmatpush1.bf16.msra.mxu0 0
    %779 = vmatprep.mubr.bf16.mxu0 0
    %780 = vmatmul.mubr.bf16.gmra.mrb[0].mxu0 %v266
    %v781 = vpop.f32.mrb[0].mxu0
    %v782 = vadd.f32 %v745, %v781
    %v783 = vpop.f32.mrb[0].mxu0
    %v784 = vpop.f32.mrb[0].mxu0
    %v785 = vadd.f32 %v745, %v784
    %v786 = vpop.f32.mrb[0].mxu0
    %787 = vmatprep.mubr.bf16.mxu0 0
    %788 = vmatmul.mubr.bf16.gmra.mrb[0].mxu0 %v269
    %v789 = vpop.f32.mrb[0].mxu0
    %v790 = vadd.f32 %v745, %v789
    %v791 = vpop.f32.mrb[0].mxu0
    %v792 = vpop.f32.mrb[0].mxu0
    %v793 = vadd.f32 %v745, %v792
    %v794 = vpop.f32.mrb[0].mxu0
    %795 = vmatprep.mubr.bf16.mxu0 0
    %796 = vmatmul.mubr.bf16.gmra.mrb[0].mxu0 %v272
    %v797 = vpop.f32.mrb[0].mxu0
    %v798 = vadd.f32 %v745, %v797
    %v799 = vpop.f32.mrb[0].mxu0
    %v800 = vpop.f32.mrb[0].mxu0
    %v801 = vadd.f32 %v745, %v800
    %v802 = vpop.f32.mrb[0].mxu0
    %803 = vmatprep.mubr.bf16.mxu0 0
    %804 = vmatmul.mubr.bf16.gmra.mrb[0].mxu0 %v275
    %v805 = vpop.f32.mrb[0].mxu0
    %v806 = vadd.f32 %v745, %v805
    %v807 = vpop.f32.mrb[0].mxu0
    %v808 = vpop.f32.mrb[0].mxu0
    %v809 = vadd.f32 %v745, %v808
    %v810 = vpop.f32.mrb[0].mxu0
    %811 = vdwg.mxu0
    %812 = vst [vmem:[#allocation9] sm:$0xff] %v782
    %813 = vst [vmem:[#allocation9 + $0x8] sm:$0xff] %v785
    %814 = vst [vmem:[#allocation9 + $0x10] sm:$0xff] %v790
    %815 = vst [vmem:[#allocation9 + $0x18] sm:$0xff] %v793
    %816 = vst [vmem:[#allocation9 + $0x20] sm:$0xff] %v798
    %817 = vst [vmem:[#allocation9 + $0x28] sm:$0xff] %v801
    %818 = vst [vmem:[#allocation9 + $0x30] sm:$0xff] %v806
    %819 = vst [vmem:[#allocation9 + $0x38] sm:$0xff] %v809
    // Predicated region
    $region30: #{tpu_custom_call.1} parent=1 // pred_check
      _
    $region31: #{tpu_custom_call.1} parent=1 // pred_check_branch
      %821 = sbr.rel (0) target = $region33
    $region32: #{tpu_custom_call.1} parent=1 // pred_region
      %s823 = ssub.s32 1024, 1024
      %824 = vsyncadd [#allocation5], %s823
      %s825 = sshll.u32 [#allocation9], 4
      %s826 = int_to_ptr.vmem [resolvable:$true] %s825
      %831 = dma.vmem_to_hbm [thread:$0]  %s826, 1024, %s4, [#allocation5], 128, 128, 8
    $region33: #{tpu_custom_call.1} parent=1 // pred_fallthru
      _
    // Predicated region
    $region34: #{tpu_custom_call.1} parent=1 // pred_check
      _
    $region35: #{tpu_custom_call.1} parent=1 // pred_check_branch
      %833 = sbr.rel (0) target = $region37
    $region36: #{tpu_custom_call.1} parent=1 // pred_region
      %834 = dma.done [#allocation5], 1024
    $region37: #{tpu_custom_call.1} parent=1 // pred_fallthru
      _
    %835 = vsyncpa [#allocation4], 1
    %836 = vsyncpa [#allocation7], 1
    %837 = vsyncpa [#allocation5], 1

</llo_original>
